<compile_context>
chip_gen: v7x
topology: tpu7x:2x2x1
jax: 0.10.0
libtpu: 0.0.40
codegen_flags: <defaults>
</compile_context>

<pallas_src>
import functools
import math
import random

import numpy as np
import jax
import jax.numpy as jnp
from jax.experimental import pallas as pl
from jax.experimental.pallas import tpu as pltpu


_LANE = 128
_MAX_TILE_P = 2048                 # output-pixel lanes per block
_MAX_TILE_Q = 512                  # source-pixel (reduction) lanes per block
_VMEM_LIMIT = 48 * 1024 * 1024     # below 64 MiB physical VMEM on v7x


def _round_up(x, m):
    return (x + m - 1) // m * m


def _cdiv(a, b):
    return -(-a // b)


def _residual_gather_kernel(band_ref, src_idx_ref, x_ref, o_ref, acc_ref, *, tile_q):
    """One step of the band-limited permutation-by-matmul gather.

    grid = (n_p_tiles, band_tiles):
      p = output-pixel tiles ("parallel", shards across TensorCores),
      q = source-pixel tiles restricted to this output tile's band
          (reduction, innermost, "arbitrary").
    """
    pi = pl.program_id(0)
    qi = pl.program_id(1)

    # Flat index of the first source pixel of this q block.
    q0 = (band_ref[pi] + qi) * tile_q

    # sel[q_local, p_local] = 1 iff source pixel (q0 + q_local) is the nearest
    # neighbour of output pixel p.  (tile_q,1) iota vs (1,tile_p) row: the
    # broadcasted compare forms the 2D mask, no full-tile integer adds.
    q_glob = jax.lax.broadcasted_iota(jnp.int32, (tile_q, 1), 0) + q0
    sel = (q_glob == src_idx_ref[...]).astype(x_ref.dtype)

    contrib = jnp.dot(x_ref[...], sel, preferred_element_type=jnp.float32)

    @pl.when(qi == 0)
    def _():
        acc_ref[...] = contrib          # no separate zero-init pass

    @pl.when(qi > 0)
    def _():
        acc_ref[...] += contrib

    @pl.when(qi == pl.num_programs(1) - 1)
    def _():
        o_ref[...] = acc_ref[...].astype(o_ref.dtype)


def _build_src_idx(H, W, resid_deg):
    """Flat source index for every output pixel of the residual rotation.

    Inverse-affine map of a resid_deg CCW rotation about the image center,
    nearest-neighbour rounding (half-to-even), -1 marks zero fill.
    Computed in float32 on the host (H, W, resid_deg are Python values).
    """
    th = math.radians(resid_deg)
    cos_t, sin_t = math.cos(th), math.sin(th)
    i = np.arange(H, dtype=np.float32)[:, None]     # output row
    j = np.arange(W, dtype=np.float32)[None, :]     # output col
    x = j - (W - 1) * 0.5
    y = i - (H - 1) * 0.5
    sx = np.round(x * cos_t - y * sin_t + (W - 1) * 0.5).astype(np.int64)
    sy = np.round(x * sin_t + y * cos_t + (H - 1) * 0.5).astype(np.int64)
    valid = (sx >= 0) & (sx < W) & (sy >= 0) & (sy < H)
    return np.where(valid, sy * W + sx, -1).astype(np.int32).reshape(-1)


def _residual_rotate(tensors, resid_deg):
    """NN rotation by resid_deg (same size, zero fill) of NCHW tensors.

    All tensors are fused along the nc axis into one (nc_pad, hw_pad) LHS and
    permuted by a single band-limited one-hot matmul pass.
    """
    H, W = tensors[0].shape[-2:]
    for t in tensors:
        assert t.shape[-2:] == (H, W), "image and mask must share spatial dims"
    hw = H * W

    # --- tiling -------------------------------------------------------------
    hw_128 = _round_up(hw, _LANE)
    tile_q = min(_MAX_TILE_Q, hw_128)
    n_q = _cdiv(hw_128, tile_q)
    max_bpp = max(1, _MAX_TILE_P // tile_q)
    # >= 2 output tiles when possible so the "parallel" axis can feed both
    # TensorCores on v7x; otherwise as few / as large tiles as possible.
    n_p = max(_cdiv(n_q, max_bpp), min(2, n_q))
    bpp = _cdiv(n_q, n_p)
    tile_p = bpp * tile_q
    hw_pad = n_p * tile_p

    # --- source index + per-output-tile band table (host, trace time) -------
    src_idx = np.full((hw_pad,), -1, dtype=np.int32)
    src_idx[:hw] = _build_src_idx(H, W, resid_deg)
    n_src_tiles = hw_pad // tile_q
    first = np.zeros((n_p,), dtype=np.int64)
    count = np.ones((n_p,), dtype=np.int64)
    for p in range(n_p):
        blk = src_idx[p * tile_p:(p + 1) * tile_p]
        valid = blk[blk >= 0]
        if valid.size:
            lo = int(valid.min()) // tile_q
            hi = int(valid.max()) // tile_q
            first[p], count[p] = lo, hi - lo + 1
    band_tiles = int(count.max())                             # q grid extent
    band_start = np.minimum(first, n_src_tiles - band_tiles).astype(np.int32)

    # --- flatten + fuse all tensors along the nc axis ------------------------
    in_dtypes = [t.dtype for t in tensors]
    common = jnp.result_type(*in_dtypes)
    compute_dtype = jnp.bfloat16 if common == jnp.bfloat16 else jnp.float32

    ncs = [t.shape[0] * t.shape[1] for t in tensors]
    nc_total = sum(ncs)
    nc_pad = _round_up(nc_total, 8)
    flat = jnp.concatenate(
        [t.reshape(nc, hw).astype(compute_dtype) for t, nc in zip(tensors, ncs)],
        axis=0)
    flat = jnp.pad(flat, ((0, nc_pad - nc_total), (0, hw_pad - hw)))

    src_idx_arr = jnp.asarray(src_idx).reshape(1, hw_pad)
    band_arr = jnp.asarray(band_start)

    kern = functools.partial(_residual_gather_kernel, tile_q=tile_q)
    out = pl.pallas_call(
        kern,
        out_shape=jax.ShapeDtypeStruct((nc_pad, hw_pad), compute_dtype),
        grid_spec=pltpu.PrefetchScalarGridSpec(
            num_scalar_prefetch=1,
            grid=(n_p, band_tiles),                        # reduction innermost
            in_specs=[
                pl.BlockSpec((1, tile_p), lambda pi, qi, band: (0, pi)),
                pl.BlockSpec((nc_pad, tile_q),
                             lambda pi, qi, band: (0, band[pi] + qi)),
            ],
            out_specs=pl.BlockSpec((nc_pad, tile_p), lambda pi, qi, band: (0, pi)),
            scratch_shapes=[pltpu.VMEM((nc_pad, tile_p), jnp.float32)],
        ),
        compiler_params=pltpu.CompilerParams(
            dimension_semantics=("parallel", "arbitrary"),
            vmem_limit_bytes=_VMEM_LIMIT,
        ),
    )(band_arr, src_idx_arr, flat)

    results, row = [], 0
    for t, nc, dt in zip(tensors, ncs, in_dtypes):
        results.append(out[row:row + nc, :hw].reshape(t.shape).astype(dt))
        row += nc
    return results


def _get_random_angle(min_angle, max_angle, do90, rng):
    if min_angle is None or max_angle is None:
        raise ValueError("min_angle and max_angle must be provided")
    rng = rng if rng is not None else random
    base_angles = (-90, 0, 0, 90) if do90 else (0,)
    base = base_angles[rng.randrange(len(base_angles))]
    return base + rng.randint(min_angle, max_angle)   # inclusive, like torch.randint(min, max+1)


def rotate_forward(image, mask=None, angle=None, *, min_angle=None, max_angle=None,
                   do90=False, rng=None):
    """JAX/Pallas equivalent of Rotate.forward(image, mask, angle)."""
    # Matches torch's `angle = angle or self.get_random_angle()` (angle=0 falls
    # back to random sampling, which raises without min/max).
    if not angle:
        angle = _get_random_angle(min_angle, max_angle, do90, rng)
    base_angle = (angle // 90) * 90
    resid = angle - base_angle
    k = (base_angle // 90) % 4

    tensors = [image] + ([mask] if mask is not None else [])
    # Exact 90-degree part (expand=True): pure layout transform -> strided copy.
    if k:
        tensors = [jnp.rot90(t, k=k, axes=(-2, -1)) for t in tensors]
    # Residual part: nearest-neighbour resample via the Pallas gather kernel.
    if resid:
        tensors = _residual_rotate(tensors, resid)

    image_out = tensors[0]
    mask_out = tensors[1] if mask is not None else None
    return image_out, mask_out


def _reference_rotate(x, angle):
    """Reference: jnp.rot90 + independent jnp gather (same index convention)."""
    base = (angle // 90) * 90
    resid = angle - base
    k = (base // 90) % 4
    r = jnp.rot90(x, k=k, axes=(-2, -1)) if k else x
    if not resid:
        return r.astype(x.dtype)
    N, C, Ho, Wo = r.shape
    idx = _build_src_idx(Ho, Wo, resid)
    safe = jnp.asarray(np.where(idx >= 0, idx, 0))
    g = jnp.take(r.reshape(N, C, Ho * Wo), safe, axis=-1)
    g = jnp.where(jnp.asarray(idx >= 0)[None, None, :], g, 0)
    return g.reshape(N, C, Ho, Wo).astype(x.dtype)


if __name__ == "__main__":
    key = jax.random.PRNGKey(0)
    k1, k2, k3, k4 = jax.random.split(key, 4)
    image = jax.random.uniform(k1, (2, 4, 16, 16), dtype=jnp.float32)
    mask = (jax.random.uniform(k2, (2, 1, 16, 16)) > 0.5).astype(jnp.float32)

    # Exact 90-degree multiples short-circuit to the rot90 permutation.
    for ang, kk in ((90, 1), (180, 2), (-90, 3)):
        out, _ = rotate_forward(image, None, angle=ang)
        jax.block_until_ready(out)
        ref = jnp.rot90(image, k=kk, axes=(-2, -1))
        assert out.shape == ref.shape and jnp.allclose(out, ref), f"rot {ang} mismatch"

    # 90-degree base (expand) + 35-degree residual; image+mask fused in one kernel.
    out_img, out_mask = rotate_forward(image, mask, angle=125)
    jax.block_until_ready(out_img)
    jax.block_until_ready(out_mask)
    assert out_img.shape == (2, 4, 16, 16) and out_mask.shape == (2, 1, 16, 16)
    assert jnp.allclose(out_img, _reference_rotate(image, 125)), "125 deg image mismatch"
    assert jnp.allclose(out_mask, _reference_rotate(mask, 125)), "125 deg mask mismatch"

    # Pure residual rotation (no 90-degree base).
    out_img, out_mask = rotate_forward(image, mask, angle=35)
    jax.block_until_ready(out_img)
    jax.block_until_ready(out_mask)
    assert jnp.allclose(out_img, _reference_rotate(image, 35)), "35 deg image mismatch"
    assert jnp.allclose(out_mask, _reference_rotate(mask, 35)), "35 deg mask mismatch"

    # Non-square, multi-tile case exercising the band-limited reduction
    # (2 output tiles, band narrower than the full source) and negative angle
    # (base -90, residual 5).
    big = jax.random.uniform(k3, (1, 3, 48, 64), dtype=jnp.float32)
    bmask = (jax.random.uniform(k4, (1, 1, 48, 64)) > 0.5).astype(jnp.float32)
    o_img, o_mask = rotate_forward(big, bmask, angle=-85)
    jax.block_until_ready(o_img)
    jax.block_until_ready(o_mask)
    assert o_img.shape == (1, 3, 64, 48) and o_mask.shape == (1, 1, 64, 48)
    assert jnp.allclose(o_img, _reference_rotate(big, -85)), "-85 deg image mismatch"
    assert jnp.allclose(o_mask, _reference_rotate(bmask, -85)), "-85 deg mask mismatch"

    print("KERNEL_OK")
</pallas_src>

<mosaic_0001>
module attributes {stable_mosaic.version = 11 : i64} {
  func.func @_residual_gather_kernel(%arg0: i32, %arg1: i32, %arg2: memref<1xi32, #tpu.memory_space<smem>>, %arg3: memref<1x256xi32, #tpu.memory_space<vmem>>, %arg4: memref<16x256xf32, #tpu.memory_space<vmem>>, %arg5: memref<16x256xf32, #tpu.memory_space<vmem>>, %arg6: memref<16x256xf32, #tpu.memory_space<vmem>>) attributes {dimension_semantics = [#tpu.dimension_semantics<parallel>, #tpu.dimension_semantics<arbitrary>], iteration_bounds = array<i64: 1, 1>, scalar_prefetch = 1 : i64, scratch_operands = 1 : i64, tpu.core_type = #tpu.core_type<tc>, window_params = [{transform_indices = @transform_0, window_bounds = array<i64: 1, 256>}, {transform_indices = @transform_1, window_bounds = array<i64: 16, 256>}, {transform_indices = @transform_2, window_bounds = array<i64: 16, 256>}]} {
    %0 = arith.index_cast %arg0 : i32 to index
    %1 = memref.load %arg2[%0] : memref<1xi32, #tpu.memory_space<smem>>
    %2 = arith.addi %1, %arg1 : i32
    %c256_i32 = arith.constant 256 : i32
    %3 = arith.muli %2, %c256_i32 : i32
    %4 = tpu.iota {dimensions = array<i32: 0>} : vector<256x1xi32>
    %5 = vector.broadcast %3 : i32 to vector<256x1xi32>
    %6 = arith.addi %4, %5 : vector<256x1xi32>
    %c0 = arith.constant 0 : index
    %c0_0 = arith.constant 0 : index
    %7 = vector.load %arg3[%c0, %c0_0] : memref<1x256xi32, #tpu.memory_space<vmem>>, vector<1x256xi32>
    %8 = vector.broadcast %6 : vector<256x1xi32> to vector<256x256xi32>
    %9 = vector.broadcast %7 : vector<1x256xi32> to vector<256x256xi32>
    %10 = arith.cmpi eq, %8, %9 : vector<256x256xi32>
    %11 = arith.extui %10 : vector<256x256xi1> to vector<256x256xi32>
    %12 = arith.sitofp %11 : vector<256x256xi32> to vector<256x256xf32>
    %c0_1 = arith.constant 0 : index
    %c0_2 = arith.constant 0 : index
    %13 = vector.load %arg4[%c0_1, %c0_2] : memref<16x256xf32, #tpu.memory_space<vmem>>, vector<16x256xf32>
    %cst = arith.constant dense<0.000000e+00> : vector<16x256xf32>
    %14 = tpu.matmul %13, %12, %cst {dimension_numbers = #tpu.dot_dimension_numbers<[1], [0], [0], [1], [0, 0, 1, 1], [], []>} : vector<16x256xf32>, vector<256x256xf32>, vector<16x256xf32> -> vector<16x256xf32>
    %c0_i32 = arith.constant 0 : i32
    %15 = arith.cmpi eq, %arg1, %c0_i32 : i32
    %16 = arith.extui %15 : i1 to i32
    %c0_i32_3 = arith.constant 0 : i32
    %17 = arith.cmpi ne, %16, %c0_i32_3 : i32
    scf.if %17 {
      %c0_8 = arith.constant 0 : index
      %c0_9 = arith.constant 0 : index
      %24 = vector.load %arg6[%c0_8, %c0_9] : memref<16x256xf32, #tpu.memory_space<vmem>>, vector<16x256xf32>
      tpu.vector_store %arg6[%c0_8, %c0_9], %14 {strides = array<i32>} : memref<16x256xf32, #tpu.memory_space<vmem>>, vector<16x256xf32>,
    } else {
    }
    %c0_i32_4 = arith.constant 0 : i32
    %18 = arith.cmpi sgt, %arg1, %c0_i32_4 : i32
    %19 = arith.extui %18 : i1 to i32
    %c0_i32_5 = arith.constant 0 : i32
    %20 = arith.cmpi ne, %19, %c0_i32_5 : i32
    scf.if %20 {
      %c0_8 = arith.constant 0 : index
      %c0_9 = arith.constant 0 : index
      %24 = vector.load %arg6[%c0_8, %c0_9] : memref<16x256xf32, #tpu.memory_space<vmem>>, vector<16x256xf32>
      %25 = arith.addf %24, %14 : vector<16x256xf32>
      %c0_10 = arith.constant 0 : index
      %c0_11 = arith.constant 0 : index
      %26 = vector.load %arg6[%c0_10, %c0_11] : memref<16x256xf32, #tpu.memory_space<vmem>>, vector<16x256xf32>
      tpu.vector_store %arg6[%c0_10, %c0_11], %25 {strides = array<i32>} : memref<16x256xf32, #tpu.memory_space<vmem>>, vector<16x256xf32>,
    } else {
    }
    %c0_i32_6 = arith.constant 0 : i32
    %21 = arith.cmpi eq, %arg1, %c0_i32_6 : i32
    %22 = arith.extui %21 : i1 to i32
    %c0_i32_7 = arith.constant 0 : i32
    %23 = arith.cmpi ne, %22, %c0_i32_7 : i32
    scf.if %23 {
      %c0_8 = arith.constant 0 : index
      %c0_9 = arith.constant 0 : index
      %24 = vector.load %arg6[%c0_8, %c0_9] : memref<16x256xf32, #tpu.memory_space<vmem>>, vector<16x256xf32>
      %c0_10 = arith.constant 0 : index
      %c0_11 = arith.constant 0 : index
      %25 = vector.load %arg5[%c0_10, %c0_11] : memref<16x256xf32, #tpu.memory_space<vmem>>, vector<16x256xf32>
      tpu.vector_store %arg5[%c0_10, %c0_11], %24 {strides = array<i32>} : memref<16x256xf32, #tpu.memory_space<vmem>>, vector<16x256xf32>,
    } else {
    }
    return
  }
  func.func @transform_0(%arg0: i32, %arg1: i32, %arg2: memref<1xi32, #tpu.memory_space<smem>>) -> (i32, i32) {
    %c0_i32 = arith.constant 0 : i32
    %c0_i32_0 = arith.constant 0 : i32
    return %c0_i32, %arg0 : i32, i32
  }
  func.func @transform_1(%arg0: i32, %arg1: i32, %arg2: memref<1xi32, #tpu.memory_space<smem>>) -> (i32, i32) {
    %0 = arith.index_cast %arg0 : i32 to index
    %1 = memref.load %arg2[%0] : memref<1xi32, #tpu.memory_space<smem>>
    %2 = arith.addi %1, %arg1 : i32
    %c0_i32 = arith.constant 0 : i32
    %c0_i32_0 = arith.constant 0 : i32
    return %c0_i32, %2 : i32, i32
  }
  func.func @transform_2(%arg0: i32, %arg1: i32, %arg2: memref<1xi32, #tpu.memory_space<smem>>) -> (i32, i32) {
    %c0_i32 = arith.constant 0 : i32
    %c0_i32_0 = arith.constant 0 : i32
    return %c0_i32, %arg0 : i32, i32
  }
}

</mosaic_0001>

<llo_original>
// kernel: tpu_custom_call.1
$region0: #{tpu_custom_call.1}
  #allocation0 [shape = 'u32[]', space=smem, size = 0x4, offset = 0x4, fixed_abs, tag = 'smem constant byte address 0x4 - core index']
  #allocation1 [shape = 'u32[144,128]{1,0:T(1,128)}', space=vmem, size = 0x12000, scoped, tag = 'internal scratch']
  #allocation2 [shape = 'f32[16,256]{1,0:T(8,128)}', space=vmem, size = 0x4000, scoped, tag = 'scratch operand']
  #allocation3 [shape = 's32[1]{0}', space=sflag, size = 0x4, scoped, tag = 'scoped memory for tpu_custom_call.1']
  #allocation4 [shape = 's32[1]{0:T(128)S(6)}', space=smem, size = 0x200, scoped, tag = 'prefetched SMEM operand 0']
  %s0 = inlined_call_operand.<no memory space> [shape: s32[1], index: 0, kind: input, shape index: {}]
  %s1 = inlined_call_operand.vmem [shape: s32[1,256], index: 1, kind: input, shape index: {}]
  %s2 = inlined_call_operand.hbm [shape: f32[16,256], index: 2, kind: input, shape index: {}]
  %s3 = inlined_call_operand.hbm [shape: f32[16,256], index: 3, kind: output, shape index: {}]
  %s4 = sld [smem:[#allocation0]]
  $region34: #{tpu_custom_call.1} parent=0
    _
  %s6 = ssub.s32 1, %s4
  %s7 = scalar_select 0, %s6, %s4
  %8 = sst [smem:[#allocation4]] %s0
  $region1: #{tpu_custom_call.1} parent=0
    #allocation5 [shape = 'u8[16384]{0}', space=vmem, size = 0x4000, scoped, tag = 'input window, operand 2, single buffered']
    #allocation6 [shape = 's32[1]{0}', space=sflag, size = 0x4, scoped, tag = 'scoped memory for tpu_custom_call.1']
    #allocation7 [shape = 's32[1]{0}', space=sflag, size = 0x4, scoped, tag = 'scoped memory for tpu_custom_call.1']
    #allocation8 [shape = 'u8[16384]{0}', space=vmem, size = 0x4000, scoped, tag = 'output window, operand 0, single buffered']
    %9 = vsyncpa [#allocation6], 0
    %10 = vsyncpa [#allocation7], 0
    // Predicated region
    $region2: #{tpu_custom_call.1} parent=1 // pred_check
      _
    $region3: #{tpu_custom_call.1} parent=1 // pred_check_branch
      %12 = sbr.rel (0) target = $region5
    $region4: #{tpu_custom_call.1} parent=1 // pred_region
      _
    $region5: #{tpu_custom_call.1} parent=1 // pred_fallthru
      _
    // Predicated region
    $region6: #{tpu_custom_call.1} parent=1 // pred_check
      _
    $region7: #{tpu_custom_call.1} parent=1 // pred_check_branch
      %14 = sbr.rel (0) target = $region9
    $region8: #{tpu_custom_call.1} parent=1 // pred_region
      %s15 = sld [smem:[#allocation4]]
      %s16 = sadd.s32 %s15, 0
      %s17 = smul.u32 2, %s16
      %s19 = ssub.s32 512, 512
      %20 = vsyncadd [#allocation6], %s19
      %s21 = smul.addr %s17, 128
      %s22 = scalar_lea.hbm %s2, %s21
      %s23 = sshll.u32 [#allocation5], 4
      %s24 = int_to_ptr.vmem [resolvable:$true] %s23
      %29 = dma.hbm_to_vmem [thread:$0]  %s22, 512, %s24, [#allocation6], 256, 256, 16
    $region9: #{tpu_custom_call.1} parent=1 // pred_fallthru
      _
    // Predicated region
    $region10: #{tpu_custom_call.1} parent=1 // pred_check
      _
    $region11: #{tpu_custom_call.1} parent=1 // pred_check_branch
      %31 = sbr.rel (0) target = $region13
    $region12: #{tpu_custom_call.1} parent=1 // pred_region
      %32 = dma.done [#allocation6], 512
    $region13: #{tpu_custom_call.1} parent=1 // pred_fallthru
      _
    %s33 = sld [smem:[#allocation4]]
    %s34 = sadd.s32 %s33, 0
    %s35 = smul.u32 2, %s34
    %s36 = sld [smem:[#allocation4]]
    %s37 = sadd.s32 %s36, 0
    %s38 = smul.u32 %s37, 256
    %v39 = vlaneseq
    %v40 = vshrl.u32 %v39, 7
    %v41 = vadd.s32 %v40, 8
    %v42 = vadd.s32 %v40, 16
    %v43 = vadd.s32 %v40, 24
    %v44 = vadd.s32 %v40, 32
    %v45 = vadd.s32 %v40, 40
    %v46 = vadd.s32 %v40, 48
    %v47 = vadd.s32 %v40, 56
    %v48 = vadd.s32 %v40, 64
    %v49 = vadd.s32 %v40, 72
    %v50 = vadd.s32 %v40, 80
    %v51 = vadd.s32 %v40, 88
    %v52 = vadd.s32 %v40, 96
    %v53 = vadd.s32 %v40, 104
    %v54 = vadd.s32 %v40, 112
    %v55 = vadd.s32 %v40, 120
    %v56 = vadd.s32 %v40, 128
    %v57 = vadd.s32 %v40, 136
    %v58 = vadd.s32 %v40, 144
    %v59 = vadd.s32 %v40, 152
    %v60 = vadd.s32 %v40, 160
    %v61 = vadd.s32 %v40, 168
    %v62 = vadd.s32 %v40, 176
    %v63 = vadd.s32 %v40, 184
    %v64 = vadd.s32 %v40, 192
    %v65 = vadd.s32 %v40, 200
    %v66 = vadd.s32 %v40, 208
    %v67 = vadd.s32 %v40, 216
    %v68 = vadd.s32 %v40, 224
    %v69 = vadd.s32 %v40, 232
    %v70 = vadd.s32 %v40, 240
    %v71 = vadd.s32 %v40, 248
    %v72 = vstv %s38
    %v73 = vadd.s32 %v40, %v72
    %v74 = vadd.s32 %v41, %v72
    %v75 = vadd.s32 %v42, %v72
    %v76 = vadd.s32 %v43, %v72
    %v77 = vadd.s32 %v44, %v72
    %v78 = vadd.s32 %v45, %v72
    %v79 = vadd.s32 %v46, %v72
    %v80 = vadd.s32 %v47, %v72
    %v81 = vadd.s32 %v48, %v72
    %v82 = vadd.s32 %v49, %v72
    %v83 = vadd.s32 %v50, %v72
    %v84 = vadd.s32 %v51, %v72
    %v85 = vadd.s32 %v52, %v72
    %v86 = vadd.s32 %v53, %v72
    %v87 = vadd.s32 %v54, %v72
    %v88 = vadd.s32 %v55, %v72
    %v89 = vadd.s32 %v56, %v72
    %v90 = vadd.s32 %v57, %v72
    %v91 = vadd.s32 %v58, %v72
    %v92 = vadd.s32 %v59, %v72
    %v93 = vadd.s32 %v60, %v72
    %v94 = vadd.s32 %v61, %v72
    %v95 = vadd.s32 %v62, %v72
    %v96 = vadd.s32 %v63, %v72
    %v97 = vadd.s32 %v64, %v72
    %v98 = vadd.s32 %v65, %v72
    %v99 = vadd.s32 %v66, %v72
    %v100 = vadd.s32 %v67, %v72
    %v101 = vadd.s32 %v68, %v72
    %v102 = vadd.s32 %v69, %v72
    %v103 = vadd.s32 %v70, %v72
    %v104 = vadd.s32 %v71, %v72
    %v105 = vld [vmem:[%s1] sm:$0x3]
    %v106 = vlaneseq
    %v107 = vshrl.u32 %v106, 7
    %v108 = vsub.s32 0, %v107
    %v109 = vrot.slane %v105, %v108
    %v110 = vlaneseq
    %v111 = vshrl.u32 %v110, 7
    %v112 = vsub.s32 1, %v111
    %v113 = vrot.slane %v105, %v112
    %vm114 = vcmp.eq.s32.totalorder %v73, %v109
    %vm115 = vcmp.eq.s32.totalorder %v73, %v113
    %vm116 = vcmp.eq.s32.totalorder %v74, %v109
    %vm117 = vcmp.eq.s32.totalorder %v74, %v113
    %vm118 = vcmp.eq.s32.totalorder %v75, %v109
    %vm119 = vcmp.eq.s32.totalorder %v75, %v113
    %vm120 = vcmp.eq.s32.totalorder %v76, %v109
    %vm121 = vcmp.eq.s32.totalorder %v76, %v113
    %vm122 = vcmp.eq.s32.totalorder %v77, %v109
    %vm123 = vcmp.eq.s32.totalorder %v77, %v113
    %vm124 = vcmp.eq.s32.totalorder %v78, %v109
    %vm125 = vcmp.eq.s32.totalorder %v78, %v113
    %vm126 = vcmp.eq.s32.totalorder %v79, %v109
    %vm127 = vcmp.eq.s32.totalorder %v79, %v113
    %vm128 = vcmp.eq.s32.totalorder %v80, %v109
    %vm129 = vcmp.eq.s32.totalorder %v80, %v113
    %vm130 = vcmp.eq.s32.totalorder %v81, %v109
    %vm131 = vcmp.eq.s32.totalorder %v81, %v113
    %vm132 = vcmp.eq.s32.totalorder %v82, %v109
    %vm133 = vcmp.eq.s32.totalorder %v82, %v113
    %vm134 = vcmp.eq.s32.totalorder %v83, %v109
    %vm135 = vcmp.eq.s32.totalorder %v83, %v113
    %vm136 = vcmp.eq.s32.totalorder %v84, %v109
    %vm137 = vcmp.eq.s32.totalorder %v84, %v113
    %vm138 = vcmp.eq.s32.totalorder %v85, %v109
    %vm139 = vcmp.eq.s32.totalorder %v85, %v113
    %vm140 = vcmp.eq.s32.totalorder %v86, %v109
    %vm141 = vcmp.eq.s32.totalorder %v86, %v113
    %vm142 = vcmp.eq.s32.totalorder %v87, %v109
    %vm143 = vcmp.eq.s32.totalorder %v87, %v113
    %vm144 = vcmp.eq.s32.totalorder %v88, %v109
    %vm145 = vcmp.eq.s32.totalorder %v88, %v113
    %vm146 = vcmp.eq.s32.totalorder %v89, %v109
    %vm147 = vcmp.eq.s32.totalorder %v89, %v113
    %vm148 = vcmp.eq.s32.totalorder %v90, %v109
    %vm149 = vcmp.eq.s32.totalorder %v90, %v113
    %vm150 = vcmp.eq.s32.totalorder %v91, %v109
    %vm151 = vcmp.eq.s32.totalorder %v91, %v113
    %vm152 = vcmp.eq.s32.totalorder %v92, %v109
    %vm153 = vcmp.eq.s32.totalorder %v92, %v113
    %vm154 = vcmp.eq.s32.totalorder %v93, %v109
    %vm155 = vcmp.eq.s32.totalorder %v93, %v113
    %vm156 = vcmp.eq.s32.totalorder %v94, %v109
    %vm157 = vcmp.eq.s32.totalorder %v94, %v113
    %vm158 = vcmp.eq.s32.totalorder %v95, %v109
    %vm159 = vcmp.eq.s32.totalorder %v95, %v113
    %vm160 = vcmp.eq.s32.totalorder %v96, %v109
    %vm161 = vcmp.eq.s32.totalorder %v96, %v113
    %vm162 = vcmp.eq.s32.totalorder %v97, %v109
    %vm163 = vcmp.eq.s32.totalorder %v97, %v113
    %vm164 = vcmp.eq.s32.totalorder %v98, %v109
    %vm165 = vcmp.eq.s32.totalorder %v98, %v113
    %vm166 = vcmp.eq.s32.totalorder %v99, %v109
    %vm167 = vcmp.eq.s32.totalorder %v99, %v113
    %vm168 = vcmp.eq.s32.totalorder %v100, %v109
    %vm169 = vcmp.eq.s32.totalorder %v100, %v113
    %vm170 = vcmp.eq.s32.totalorder %v101, %v109
    %vm171 = vcmp.eq.s32.totalorder %v101, %v113
    %vm172 = vcmp.eq.s32.totalorder %v102, %v109
    %vm173 = vcmp.eq.s32.totalorder %v102, %v113
    %vm174 = vcmp.eq.s32.totalorder %v103, %v109
    %vm175 = vcmp.eq.s32.totalorder %v103, %v113
    %vm176 = vcmp.eq.s32.totalorder %v104, %v109
    %vm177 = vcmp.eq.s32.totalorder %v104, %v113
    %v178 = vsel %vm114, 1, 0
    %v179 = vsel %vm115, 1, 0
    %v180 = vsel %vm116, 1, 0
    %v181 = vsel %vm117, 1, 0
    %v182 = vsel %vm118, 1, 0
    %v183 = vsel %vm119, 1, 0
    %v184 = vsel %vm120, 1, 0
    %v185 = vsel %vm121, 1, 0
    %v186 = vsel %vm122, 1, 0
    %v187 = vsel %vm123, 1, 0
    %v188 = vsel %vm124, 1, 0
    %v189 = vsel %vm125, 1, 0
    %v190 = vsel %vm126, 1, 0
    %v191 = vsel %vm127, 1, 0
    %v192 = vsel %vm128, 1, 0
    %v193 = vsel %vm129, 1, 0
    %v194 = vsel %vm130, 1, 0
    %v195 = vsel %vm131, 1, 0
    %v196 = vsel %vm132, 1, 0
    %v197 = vsel %vm133, 1, 0
    %v198 = vsel %vm134, 1, 0
    %v199 = vsel %vm135, 1, 0
    %v200 = vsel %vm136, 1, 0
    %v201 = vsel %vm137, 1, 0
    %v202 = vsel %vm138, 1, 0
    %v203 = vsel %vm139, 1, 0
    %v204 = vsel %vm140, 1, 0
    %v205 = vsel %vm141, 1, 0
    %v206 = vsel %vm142, 1, 0
    %v207 = vsel %vm143, 1, 0
    %v208 = vsel %vm144, 1, 0
    %v209 = vsel %vm145, 1, 0
    %v210 = vsel %vm146, 1, 0
    %v211 = vsel %vm147, 1, 0
    %v212 = vsel %vm148, 1, 0
    %v213 = vsel %vm149, 1, 0
    %v214 = vsel %vm150, 1, 0
    %v215 = vsel %vm151, 1, 0
    %v216 = vsel %vm152, 1, 0
    %v217 = vsel %vm153, 1, 0
    %v218 = vsel %vm154, 1, 0
    %v219 = vsel %vm155, 1, 0
    %v220 = vsel %vm156, 1, 0
    %v221 = vsel %vm157, 1, 0
    %v222 = vsel %vm158, 1, 0
    %v223 = vsel %vm159, 1, 0
    %v224 = vsel %vm160, 1, 0
    %v225 = vsel %vm161, 1, 0
    %v226 = vsel %vm162, 1, 0
    %v227 = vsel %vm163, 1, 0
    %v228 = vsel %vm164, 1, 0
    %v229 = vsel %vm165, 1, 0
    %v230 = vsel %vm166, 1, 0
    %v231 = vsel %vm167, 1, 0
    %v232 = vsel %vm168, 1, 0
    %v233 = vsel %vm169, 1, 0
    %v234 = vsel %vm170, 1, 0
    %v235 = vsel %vm171, 1, 0
    %v236 = vsel %vm172, 1, 0
    %v237 = vsel %vm173, 1, 0
    %v238 = vsel %vm174, 1, 0
    %v239 = vsel %vm175, 1, 0
    %v240 = vsel %vm176, 1, 0
    %v241 = vsel %vm177, 1, 0
    %v242 = vcvt.s32.f32 %v178
    %v243 = vcvt.s32.f32 %v179
    %v244 = vcvt.s32.f32 %v180
    %v245 = vcvt.s32.f32 %v181
    %v246 = vcvt.s32.f32 %v182
    %v247 = vcvt.s32.f32 %v183
    %v248 = vcvt.s32.f32 %v184
    %v249 = vcvt.s32.f32 %v185
    %v250 = vcvt.s32.f32 %v186
    %v251 = vcvt.s32.f32 %v187
    %v252 = vcvt.s32.f32 %v188
    %v253 = vcvt.s32.f32 %v189
    %v254 = vcvt.s32.f32 %v190
    %v255 = vcvt.s32.f32 %v191
    %v256 = vcvt.s32.f32 %v192
    %v257 = vcvt.s32.f32 %v193
    %v258 = vcvt.s32.f32 %v194
    %v259 = vcvt.s32.f32 %v195
    %v260 = vcvt.s32.f32 %v196
    %v261 = vcvt.s32.f32 %v197
    %v262 = vcvt.s32.f32 %v198
    %v263 = vcvt.s32.f32 %v199
    %v264 = vcvt.s32.f32 %v200
    %v265 = vcvt.s32.f32 %v201
    %v266 = vcvt.s32.f32 %v202
    %v267 = vcvt.s32.f32 %v203
    %v268 = vcvt.s32.f32 %v204
    %v269 = vcvt.s32.f32 %v205
    %v270 = vcvt.s32.f32 %v206
    %v271 = vcvt.s32.f32 %v207
    %v272 = vcvt.s32.f32 %v208
    %v273 = vcvt.s32.f32 %v209
    %v274 = vcvt.s32.f32 %v210
    %v275 = vcvt.s32.f32 %v211
    %v276 = vcvt.s32.f32 %v212
    %v277 = vcvt.s32.f32 %v213
    %v278 = vcvt.s32.f32 %v214
    %v279 = vcvt.s32.f32 %v215
    %v280 = vcvt.s32.f32 %v216
    %v281 = vcvt.s32.f32 %v217
    %v282 = vcvt.s32.f32 %v218
    %v283 = vcvt.s32.f32 %v219
    %v284 = vcvt.s32.f32 %v220
    %v285 = vcvt.s32.f32 %v221
    %v286 = vcvt.s32.f32 %v222
    %v287 = vcvt.s32.f32 %v223
    %v288 = vcvt.s32.f32 %v224
    %v289 = vcvt.s32.f32 %v225
    %v290 = vcvt.s32.f32 %v226
    %v291 = vcvt.s32.f32 %v227
    %v292 = vcvt.s32.f32 %v228
    %v293 = vcvt.s32.f32 %v229
    %v294 = vcvt.s32.f32 %v230
    %v295 = vcvt.s32.f32 %v231
    %v296 = vcvt.s32.f32 %v232
    %v297 = vcvt.s32.f32 %v233
    %v298 = vcvt.s32.f32 %v234
    %v299 = vcvt.s32.f32 %v235
    %v300 = vcvt.s32.f32 %v236
    %v301 = vcvt.s32.f32 %v237
    %v302 = vcvt.s32.f32 %v238
    %v303 = vcvt.s32.f32 %v239
    %v304 = vcvt.s32.f32 %v240
    %v305 = vcvt.s32.f32 %v241
    %v306 = vld [vmem:[#allocation5] sm:$0xff]
    %v307 = vld [vmem:[#allocation5 + $0x8] sm:$0xff]
    %v308 = vld [vmem:[#allocation5 + $0x10] sm:$0xff]
    %v309 = vld [vmem:[#allocation5 + $0x18] sm:$0xff]
    %310 = vmatprep.subr.mxu0 %v243
    %311 = vmatpush1.msra.mxu0 %v242
    %312 = vmatprep.subr.mxu0 %v245
    %313 = vmatpush1.msra.mxu0 %v244
    %314 = vmatprep.subr.mxu0 %v247
    %315 = vmatpush1.msra.mxu0 %v246
    %316 = vmatprep.subr.mxu0 %v249
    %317 = vmatpush1.msra.mxu0 %v248
    %318 = vmatprep.subr.mxu0 %v251
    %319 = vmatpush1.msra.mxu0 %v250
    %320 = vmatprep.subr.mxu0 %v253
    %321 = vmatpush1.msra.mxu0 %v252
    %322 = vmatprep.subr.mxu0 %v255
    %323 = vmatpush1.msra.mxu0 %v254
    %324 = vmatprep.subr.mxu0 %v257
    %325 = vmatpush1.msra.mxu0 %v256
    %326 = vmatprep.subr.mxu0 %v259
    %327 = vmatpush1.msra.mxu0 %v258
    %328 = vmatprep.subr.mxu0 %v261
    %329 = vmatpush1.msra.mxu0 %v260
    %330 = vmatprep.subr.mxu0 %v263
    %331 = vmatpush1.msra.mxu0 %v262
    %332 = vmatprep.subr.mxu0 %v265
    %333 = vmatpush1.msra.mxu0 %v264
    %334 = vmatprep.subr.mxu0 %v267
    %335 = vmatpush1.msra.mxu0 %v266
    %336 = vmatprep.subr.mxu0 %v269
    %337 = vmatpush1.msra.mxu0 %v268
    %338 = vmatprep.subr.mxu0 %v271
    %339 = vmatpush1.msra.mxu0 %v270
    %340 = vmatprep.subr.mxu0 %v273
    %341 = vmatpush1.msra.mxu0 %v272
    %342 = vmatprep.subr.mxu0 %v275
    %343 = vmatpush1.msra.mxu0 %v274
    %344 = vmatprep.subr.mxu0 %v277
    %345 = vmatpush1.msra.mxu0 %v276
    %346 = vmatprep.subr.mxu0 %v279
    %347 = vmatpush1.msra.mxu0 %v278
    %348 = vmatprep.subr.mxu0 %v281
    %349 = vmatpush1.msra.mxu0 %v280
    %350 = vmatprep.subr.mxu0 %v283
    %351 = vmatpush1.msra.mxu0 %v282
    %352 = vmatprep.subr.mxu0 %v285
    %353 = vmatpush1.msra.mxu0 %v284
    %354 = vmatprep.subr.mxu0 %v287
    %355 = vmatpush1.msra.mxu0 %v286
    %356 = vmatprep.subr.mxu0 %v289
    %357 = vmatpush1.msra.mxu0 %v288
    %358 = vmatprep.subr.mxu0 %v291
    %359 = vmatpush1.msra.mxu0 %v290
    %360 = vmatprep.subr.mxu0 %v293
    %361 = vmatpush1.msra.mxu0 %v292
    %362 = vmatprep.subr.mxu0 %v295
    %363 = vmatpush1.msra.mxu0 %v294
    %364 = vmatprep.subr.mxu0 %v297
    %365 = vmatpush1.msra.mxu0 %v296
    %366 = vmatprep.subr.mxu0 %v299
    %367 = vmatpush1.msra.mxu0 %v298
    %368 = vmatprep.subr.mxu0 %v301
    %369 = vmatpush1.msra.mxu0 %v300
    %370 = vmatprep.subr.mxu0 %v303
    %371 = vmatpush1.msra.mxu0 %v302
    %372 = vmatprep.subr.mxu0 %v305
    %373 = vmatpush1.msra.mxu0 %v304
    %374 = vmatprep.mubr.f32.mxu0 %v307
    %375 = vmatmul.mubr.f32.gmra.mrb[0].mxu0 %v306
    %v376 = vpop.f32.mrb[0].mxu0
    %v377 = vadd.f32 0.0, %v376
    %v378 = vpop.f32.mrb[0].mxu0
    %v379 = vadd.f32 0.0, %v378
    %380 = vmatprep.mubr.f32.mxu0 %v309
    %381 = vmatmul.mubr.f32.gmra.mrb[0].mxu0 %v308
    %v382 = vpop.f32.mrb[0].mxu0
    %v383 = vadd.f32 0.0, %v382
    %v384 = vpop.f32.mrb[0].mxu0
    %v385 = vadd.f32 0.0, %v384
    %386 = vdwg.mxu0
    %p387 = scmp.eq.s32.totalorder 0, 0
    // Predicated region
    $region14: #{tpu_custom_call.1} parent=1 // pred_check
      %p388 = pneg %p387
    $region15: #{tpu_custom_call.1} parent=1 // pred_check_branch
      %390 = sbr.rel (%p388) target = $region17
    $region16: #{tpu_custom_call.1} parent=1 // pred_region
      %391 = vst [vmem:[#allocation2] sm:$0xff] %v377
      %392 = vst [vmem:[#allocation2 + $0x8] sm:$0xff] %v379
      %393 = vst [vmem:[#allocation2 + $0x10] sm:$0xff] %v383
      %394 = vst [vmem:[#allocation2 + $0x18] sm:$0xff] %v385
    $region17: #{tpu_custom_call.1} parent=1 // pred_fallthru
      _
    %p395 = scmp.gt.s32.totalorder 0, 0
    // Predicated region
    $region18: #{tpu_custom_call.1} parent=1 // pred_check
      %p396 = pneg %p395
    $region19: #{tpu_custom_call.1} parent=1 // pred_check_branch
      %398 = sbr.rel (%p396) target = $region21
    $region20: #{tpu_custom_call.1} parent=1 // pred_region
      %v399 = vld [vmem:[#allocation2] sm:$0xff]
      %v400 = vld [vmem:[#allocation2 + $0x8] sm:$0xff]
      %v401 = vld [vmem:[#allocation2 + $0x10] sm:$0xff]
      %v402 = vld [vmem:[#allocation2 + $0x18] sm:$0xff]
      %v403 = vadd.f32 %v399, %v377
      %v404 = vadd.f32 %v400, %v379
      %v405 = vadd.f32 %v401, %v383
      %v406 = vadd.f32 %v402, %v385
      %407 = vst [vmem:[#allocation2] sm:$0xff] %v403
      %408 = vst [vmem:[#allocation2 + $0x8] sm:$0xff] %v404
      %409 = vst [vmem:[#allocation2 + $0x10] sm:$0xff] %v405
      %410 = vst [vmem:[#allocation2 + $0x18] sm:$0xff] %v406
    $region21: #{tpu_custom_call.1} parent=1 // pred_fallthru
      _
    // Predicated region
    $region22: #{tpu_custom_call.1} parent=1 // pred_check
      %p411 = pneg %p387
    $region23: #{tpu_custom_call.1} parent=1 // pred_check_branch
      %413 = sbr.rel (%p411) target = $region25
    $region24: #{tpu_custom_call.1} parent=1 // pred_region
      %v414 = vld [vmem:[#allocation2] sm:$0xff]
      %v415 = vld [vmem:[#allocation2 + $0x8] sm:$0xff]
      %v416 = vld [vmem:[#allocation2 + $0x10] sm:$0xff]
      %v417 = vld [vmem:[#allocation2 + $0x18] sm:$0xff]
      %418 = vst [vmem:[#allocation8] sm:$0xff] %v414
      %419 = vst [vmem:[#allocation8 + $0x8] sm:$0xff] %v415
      %420 = vst [vmem:[#allocation8 + $0x10] sm:$0xff] %v416
      %421 = vst [vmem:[#allocation8 + $0x18] sm:$0xff] %v417
    $region25: #{tpu_custom_call.1} parent=1 // pred_fallthru
      _
    // Predicated region
    $region26: #{tpu_custom_call.1} parent=1 // pred_check
      _
    $region27: #{tpu_custom_call.1} parent=1 // pred_check_branch
      %423 = sbr.rel (0) target = $region29
    $region28: #{tpu_custom_call.1} parent=1 // pred_region
      %s425 = ssub.s32 512, 512
      %426 = vsyncadd [#allocation7], %s425
      %s427 = sshll.u32 [#allocation8], 4
      %s428 = int_to_ptr.vmem [resolvable:$true] %s427
      %433 = dma.vmem_to_hbm [thread:$0]  %s428, 512, %s3, [#allocation7], 256, 256, 16
    $region29: #{tpu_custom_call.1} parent=1 // pred_fallthru
      _
    // Predicated region
    $region30: #{tpu_custom_call.1} parent=1 // pred_check
      _
    $region31: #{tpu_custom_call.1} parent=1 // pred_check_branch
      %435 = sbr.rel (0) target = $region33
    $region32: #{tpu_custom_call.1} parent=1 // pred_region
      %436 = dma.done [#allocation7], 512
    $region33: #{tpu_custom_call.1} parent=1 // pred_fallthru
      _
    %437 = vsyncpa [#allocation6], 1
    %438 = vsyncpa [#allocation7], 1

</llo_original>
